<compile_context>
chip_gen: v7x
topology: tpu7x:2x2x1
jax: 0.10.0
libtpu: 0.0.40
codegen_flags: <defaults>
</compile_context>

<pallas_src>
import jax
import jax.numpy as jnp
from jax.experimental import pallas as pl
from jax.experimental.pallas import tpu as pltpu


def ffn_layer_kernel(x_ref, w1_ref, b1_ref, w2_ref, b2_ref, g_ref, beta_ref, o_ref):
    # x_ref: (TM, E); w1: (E, H); b1: (1, H); w2: (H, E); b2/g/beta: (1, E)

    # Linear1 + ReLU. Native operand dtypes on the MXU, f32 accumulation.
    h = jnp.dot(x_ref[...], w1_ref[...], preferred_element_type=jnp.float32)
    h = h + b1_ref[...].astype(jnp.float32)
    h = jnp.maximum(h, 0.0)

    # Linear2. Downcast the f32 hidden to the weight dtype (no-op for f32
    # weights, lets bf16 weights run at native MXU rate).
    y = jnp.dot(h.astype(w2_ref.dtype), w2_ref[...],
                preferred_element_type=jnp.float32)
    y = y + b2_ref[...].astype(jnp.float32)

    # Residual + LayerNorm epilogue in f32 (v5e VPU/EUP have no bf16 path).
    y = x_ref[...].astype(jnp.float32) + y
    mean = jnp.mean(y, axis=-1, keepdims=True)
    centered = y - mean
    var = jnp.mean(centered * centered, axis=-1, keepdims=True)
    y_norm = centered * jax.lax.rsqrt(var + 1e-5)
    out = y_norm * g_ref[...].astype(jnp.float32) + beta_ref[...].astype(jnp.float32)

    o_ref[...] = out.astype(o_ref.dtype)


def ffn_layer(x, w1, b1, w2, b2, gamma, beta, *, tm=256):
    """x: (..., embed_dim). Returns same shape/dtype."""
    orig_shape = x.shape
    E = orig_shape[-1]
    H = w1.shape[1]
    x2 = x.reshape(-1, E)
    n_tok = x2.shape[0]

    x_itemsize = jnp.dtype(x.dtype).itemsize
    w_itemsize = jnp.dtype(w1.dtype).itemsize

    # Sublane pack: 8 rows for f32, 16 for bf16, 32 for int8/fp8.
    pack = max(8, 32 // x_itemsize)

    # Don't tile past what the problem needs; keep tm a multiple of the pack.
    tm = max(pack, min(tm, pl.cdiv(n_tok, pack) * pack))
    tm = (tm // pack) * pack

    # Rough VMEM estimate: double-buffered x/out tiles + double-buffered
    # weights/vectors + f32 hidden activation + epilogue temporaries.
    def vmem_estimate(tm_):
        tile_io = 2 * 2 * tm_ * E * x_itemsize
        weights = 2 * (E * H + H * E + H + 3 * E) * w_itemsize
        temps = tm_ * H * 4 + 3 * tm_ * E * 4
        return tile_io + weights + temps

    # Keep the tile well under v7x's 64 MiB VMEM.
    VMEM_BUDGET = 40 * 1024 * 1024
    while tm > pack and vmem_estimate(tm) > VMEM_BUDGET:
        tm = max(pack, (tm // 2 // pack) * pack)
    # TODO(synk): for hidden_dim >= 4096, add an 'arbitrary' K-tiled grid axis
    # over H with a VMEM accumulator instead of keeping both weights resident.
    # TODO(synk): if embed_dim < 128 and token counts are large, present a
    # lane-dense output slab (fold tokens into lanes) to avoid masked vst.msk.

    pad = (-n_tok) % tm
    if pad:
        x2 = jnp.pad(x2, ((0, pad), (0, 0)))
    n_pad = x2.shape[0]

    # 2D views of the vectors for TPU-friendly layout.
    b1_2 = b1.reshape(1, H)
    b2_2 = b2.reshape(1, E)
    g_2 = gamma.reshape(1, E)
    be_2 = beta.reshape(1, E)

    grid = (n_pad // tm,)

    cost = pl.CostEstimate(
        flops=int(4 * n_pad * E * H + 10 * n_pad * E),
        transcendentals=int(n_pad),
        bytes_accessed=int(2 * n_pad * E * x_itemsize
                           + (E * H + H * E + H + 3 * E) * w_itemsize),
    )

    vmem_limit = max(32 * 1024 * 1024,
                     min(vmem_estimate(tm) + 4 * 1024 * 1024, 48 * 1024 * 1024))

    out = pl.pallas_call(
        ffn_layer_kernel,
        out_shape=jax.ShapeDtypeStruct((n_pad, E), x.dtype),
        grid_spec=pltpu.PrefetchScalarGridSpec(
            num_scalar_prefetch=0,
            grid=grid,
            in_specs=[
                pl.BlockSpec((tm, E), lambda i: (i, 0)),   # x tile
                pl.BlockSpec((E, H), lambda i: (0, 0)),    # W1 (full, resident)
                pl.BlockSpec((1, H), lambda i: (0, 0)),    # b1
                pl.BlockSpec((H, E), lambda i: (0, 0)),    # W2 (full, resident)
                pl.BlockSpec((1, E), lambda i: (0, 0)),    # b2
                pl.BlockSpec((1, E), lambda i: (0, 0)),    # gamma
                pl.BlockSpec((1, E), lambda i: (0, 0)),    # beta
            ],
            out_specs=pl.BlockSpec((tm, E), lambda i: (i, 0)),
        ),
        compiler_params=pltpu.CompilerParams(
            dimension_semantics=("parallel",),   # v7x: shard tokens across 2 TCs
            vmem_limit_bytes=int(vmem_limit),
        ),
        cost_estimate=cost,
    )(x2, w1, b1_2, w2, b2_2, g_2, be_2)

    if pad:
        out = out[:n_tok]
    return out.reshape(orig_shape)


def ffn_layer_ref(x, w1, b1, w2, b2, gamma, beta):
    h = jnp.maximum(x @ w1 + b1, 0.0)
    y = h @ w2 + b2
    y = x + y
    mean = jnp.mean(y, axis=-1, keepdims=True)
    var = jnp.mean((y - mean) ** 2, axis=-1, keepdims=True)
    return (y - mean) / jnp.sqrt(var + 1e-5) * gamma + beta


if __name__ == "__main__":
    # Small shapes: seq=8, batch=2, embed_dim=32, hidden_dim=64
    seq, batch, embed_dim, hidden_dim = 8, 2, 32, 64

    key = jax.random.PRNGKey(0)
    kx, k1, k2, k3, k4 = jax.random.split(key, 5)

    x = jax.random.normal(kx, (seq, batch, embed_dim), dtype=jnp.float32)

    # Linear weights stored as (in, out) so the kernel computes x @ W,
    # equivalent to PyTorch's x @ W^T with W=(out, in).
    w1 = jax.random.normal(k1, (embed_dim, hidden_dim), dtype=jnp.float32) * 0.1
    b1 = jax.random.normal(k2, (hidden_dim,), dtype=jnp.float32) * 0.1
    w2 = jax.random.normal(k3, (hidden_dim, embed_dim), dtype=jnp.float32) * 0.1
    b2 = jax.random.normal(k4, (embed_dim,), dtype=jnp.float32) * 0.1
    gamma = jnp.ones((embed_dim,), dtype=jnp.float32)
    beta = jnp.zeros((embed_dim,), dtype=jnp.float32)

    out = ffn_layer(x, w1, b1, w2, b2, gamma, beta)
    out = jax.block_until_ready(out)

    ref = ffn_layer_ref(x, w1, b1, w2, b2, gamma, beta)
    assert out.shape == x.shape
    assert jnp.allclose(out, ref, atol=1e-4, rtol=1e-4), "mismatch vs reference"

    print("KERNEL_OK")
</pallas_src>

<mosaic_0001>
module attributes {stable_mosaic.version = 11 : i64} {
  func.func @ffn_layer_kernel(%arg0: i32, %arg1: memref<16x32xf32, #tpu.memory_space<vmem>>, %arg2: memref<32x64xf32, #tpu.memory_space<vmem>>, %arg3: memref<1x64xf32, #tpu.memory_space<vmem>>, %arg4: memref<64x32xf32, #tpu.memory_space<vmem>>, %arg5: memref<1x32xf32, #tpu.memory_space<vmem>>, %arg6: memref<1x32xf32, #tpu.memory_space<vmem>>, %arg7: memref<1x32xf32, #tpu.memory_space<vmem>>, %arg8: memref<16x32xf32, #tpu.memory_space<vmem>>) attributes {dimension_semantics = [#tpu.dimension_semantics<parallel>], iteration_bounds = array<i64: 1>, scalar_prefetch = 0 : i64, scratch_operands = 0 : i64, tpu.core_type = #tpu.core_type<tc>, window_params = [{transform_indices = @transform_0, window_bounds = array<i64: 16, 32>}, {pipeline_mode = #tpu.pipeline_mode<synchronous>, transform_indices = @transform_1, window_bounds = array<i64: 32, 64>}, {pipeline_mode = #tpu.pipeline_mode<synchronous>, transform_indices = @transform_2, window_bounds = array<i64: 1, 64>}, {pipeline_mode = #tpu.pipeline_mode<synchronous>, transform_indices = @transform_3, window_bounds = array<i64: 64, 32>}, {pipeline_mode = #tpu.pipeline_mode<synchronous>, transform_indices = @transform_4, window_bounds = array<i64: 1, 32>}, {pipeline_mode = #tpu.pipeline_mode<synchronous>, transform_indices = @transform_5, window_bounds = array<i64: 1, 32>}, {pipeline_mode = #tpu.pipeline_mode<synchronous>, transform_indices = @transform_6, window_bounds = array<i64: 1, 32>}, {transform_indices = @transform_7, window_bounds = array<i64: 16, 32>}]} {
    %c0 = arith.constant 0 : index
    %c0_0 = arith.constant 0 : index
    %0 = vector.load %arg1[%c0, %c0_0] : memref<16x32xf32, #tpu.memory_space<vmem>>, vector<16x32xf32>
    %c0_1 = arith.constant 0 : index
    %c0_2 = arith.constant 0 : index
    %1 = vector.load %arg2[%c0_1, %c0_2] : memref<32x64xf32, #tpu.memory_space<vmem>>, vector<32x64xf32>
    %cst = arith.constant dense<0.000000e+00> : vector<16x64xf32>
    %2 = tpu.matmul %0, %1, %cst {dimension_numbers = #tpu.dot_dimension_numbers<[1], [0], [0], [1], [0, 0, 1, 1], [], []>} : vector<16x32xf32>, vector<32x64xf32>, vector<16x64xf32> -> vector<16x64xf32>
    %c0_3 = arith.constant 0 : index
    %c0_4 = arith.constant 0 : index
    %3 = vector.load %arg3[%c0_3, %c0_4] : memref<1x64xf32, #tpu.memory_space<vmem>>, vector<1x64xf32>
    %4 = vector.broadcast %3 : vector<1x64xf32> to vector<16x64xf32>
    %5 = arith.addf %2, %4 : vector<16x64xf32>
    %cst_5 = arith.constant 0.000000e+00 : f32
    %6 = vector.broadcast %cst_5 : f32 to vector<16x64xf32>
    %7 = arith.maximumf %5, %6 : vector<16x64xf32>
    %c0_6 = arith.constant 0 : index
    %c0_7 = arith.constant 0 : index
    %8 = vector.load %arg4[%c0_6, %c0_7] : memref<64x32xf32, #tpu.memory_space<vmem>>, vector<64x32xf32>
    %cst_8 = arith.constant dense<0.000000e+00> : vector<16x32xf32>
    %9 = tpu.matmul %7, %8, %cst_8 {dimension_numbers = #tpu.dot_dimension_numbers<[1], [0], [0], [1], [0, 0, 1, 1], [], []>} : vector<16x64xf32>, vector<64x32xf32>, vector<16x32xf32> -> vector<16x32xf32>
    %c0_9 = arith.constant 0 : index
    %c0_10 = arith.constant 0 : index
    %10 = vector.load %arg5[%c0_9, %c0_10] : memref<1x32xf32, #tpu.memory_space<vmem>>, vector<1x32xf32>
    %11 = vector.broadcast %10 : vector<1x32xf32> to vector<16x32xf32>
    %12 = arith.addf %9, %11 : vector<16x32xf32>
    %c0_11 = arith.constant 0 : index
    %c0_12 = arith.constant 0 : index
    %13 = vector.load %arg1[%c0_11, %c0_12] : memref<16x32xf32, #tpu.memory_space<vmem>>, vector<16x32xf32>
    %14 = arith.addf %13, %12 : vector<16x32xf32>
    %cst_13 = arith.constant dense<0.000000e+00> : vector<16xf32>
    %15 = vector.multi_reduction <add>, %14, %cst_13 [1] : vector<16x32xf32> to vector<16xf32>
    %16 = vector.shape_cast %15 : vector<16xf32> to vector<16x1xf32>
    %cst_14 = arith.constant 3.200000e+01 : f32
    %17 = vector.broadcast %cst_14 : f32 to vector<16x1xf32>
    %18 = arith.divf %16, %17 : vector<16x1xf32>
    %19 = vector.broadcast %18 : vector<16x1xf32> to vector<16x32xf32>
    %20 = arith.subf %14, %19 : vector<16x32xf32>
    %21 = arith.mulf %20, %20 : vector<16x32xf32>
    %cst_15 = arith.constant dense<0.000000e+00> : vector<16xf32>
    %22 = vector.multi_reduction <add>, %21, %cst_15 [1] : vector<16x32xf32> to vector<16xf32>
    %23 = vector.shape_cast %22 : vector<16xf32> to vector<16x1xf32>
    %cst_16 = arith.constant 3.200000e+01 : f32
    %24 = vector.broadcast %cst_16 : f32 to vector<16x1xf32>
    %25 = arith.divf %23, %24 : vector<16x1xf32>
    %cst_17 = arith.constant 9.99999974E-6 : f32
    %26 = vector.broadcast %cst_17 : f32 to vector<16x1xf32>
    %27 = arith.addf %25, %26 : vector<16x1xf32>
    %28 = math.rsqrt %27 : vector<16x1xf32>
    %29 = vector.broadcast %28 : vector<16x1xf32> to vector<16x32xf32>
    %30 = arith.mulf %20, %29 : vector<16x32xf32>
    %c0_18 = arith.constant 0 : index
    %c0_19 = arith.constant 0 : index
    %31 = vector.load %arg6[%c0_18, %c0_19] : memref<1x32xf32, #tpu.memory_space<vmem>>, vector<1x32xf32>
    %32 = vector.broadcast %31 : vector<1x32xf32> to vector<16x32xf32>
    %33 = arith.mulf %30, %32 : vector<16x32xf32>
    %c0_20 = arith.constant 0 : index
    %c0_21 = arith.constant 0 : index
    %34 = vector.load %arg7[%c0_20, %c0_21] : memref<1x32xf32, #tpu.memory_space<vmem>>, vector<1x32xf32>
    %35 = vector.broadcast %34 : vector<1x32xf32> to vector<16x32xf32>
    %36 = arith.addf %33, %35 : vector<16x32xf32>
    %c0_22 = arith.constant 0 : index
    %c0_23 = arith.constant 0 : index
    %37 = vector.load %arg8[%c0_22, %c0_23] : memref<16x32xf32, #tpu.memory_space<vmem>>, vector<16x32xf32>
    tpu.vector_store %arg8[%c0_22, %c0_23], %36 {strides = array<i32>} : memref<16x32xf32, #tpu.memory_space<vmem>>, vector<16x32xf32>,
    return
  }
  func.func @transform_0(%arg0: i32) -> (i32, i32) {
    %c0_i32 = arith.constant 0 : i32
    %c0_i32_0 = arith.constant 0 : i32
    return %arg0, %c0_i32 : i32, i32
  }
  func.func @transform_1(%arg0: i32) -> (i32, i32) {
    %c0_i32 = arith.constant 0 : i32
    %c0_i32_0 = arith.constant 0 : i32
    %c0_i32_1 = arith.constant 0 : i32
    return %c0_i32, %c0_i32_0 : i32, i32
  }
  func.func @transform_2(%arg0: i32) -> (i32, i32) {
    %c0_i32 = arith.constant 0 : i32
    %c0_i32_0 = arith.constant 0 : i32
    %c0_i32_1 = arith.constant 0 : i32
    return %c0_i32, %c0_i32_0 : i32, i32
  }
  func.func @transform_3(%arg0: i32) -> (i32, i32) {
    %c0_i32 = arith.constant 0 : i32
    %c0_i32_0 = arith.constant 0 : i32
    %c0_i32_1 = arith.constant 0 : i32
    return %c0_i32, %c0_i32_0 : i32, i32
  }
  func.func @transform_4(%arg0: i32) -> (i32, i32) {
    %c0_i32 = arith.constant 0 : i32
    %c0_i32_0 = arith.constant 0 : i32
    %c0_i32_1 = arith.constant 0 : i32
    return %c0_i32, %c0_i32_0 : i32, i32
  }
  func.func @transform_5(%arg0: i32) -> (i32, i32) {
    %c0_i32 = arith.constant 0 : i32
    %c0_i32_0 = arith.constant 0 : i32
    %c0_i32_1 = arith.constant 0 : i32
    return %c0_i32, %c0_i32_0 : i32, i32
  }
  func.func @transform_6(%arg0: i32) -> (i32, i32) {
    %c0_i32 = arith.constant 0 : i32
    %c0_i32_0 = arith.constant 0 : i32
    %c0_i32_1 = arith.constant 0 : i32
    return %c0_i32, %c0_i32_0 : i32, i32
  }
  func.func @transform_7(%arg0: i32) -> (i32, i32) {
    %c0_i32 = arith.constant 0 : i32
    %c0_i32_0 = arith.constant 0 : i32
    return %arg0, %c0_i32 : i32, i32
  }
}

</mosaic_0001>

<llo_original>
// kernel: tpu_custom_call.1
$region0: #{tpu_custom_call.1}
  #allocation0 [shape = 'u32[]', space=smem, size = 0x4, offset = 0x4, fixed_abs, tag = 'smem constant byte address 0x4 - core index']
  #allocation1 [shape = 'u32[144,128]{1,0:T(1,128)}', space=vmem, size = 0x12000, scoped, tag = 'internal scratch']
  %s0 = inlined_call_operand.vmem [shape: f32[16,32], index: 0, kind: input, shape index: {}]
  %s1 = inlined_call_operand.vmem [shape: f32[32,64], index: 1, kind: input, shape index: {}]
  %s2 = inlined_call_operand.vmem [shape: f32[1,64], index: 2, kind: input, shape index: {}]
  %s3 = inlined_call_operand.vmem [shape: f32[64,32], index: 3, kind: input, shape index: {}]
  %s4 = inlined_call_operand.vmem [shape: f32[1,32], index: 4, kind: input, shape index: {}]
  %s5 = inlined_call_operand.vmem [shape: f32[1,32], index: 5, kind: input, shape index: {}]
  %s6 = inlined_call_operand.vmem [shape: f32[1,32], index: 6, kind: input, shape index: {}]
  %s7 = inlined_call_operand.hbm [shape: f32[16,32], index: 7, kind: output, shape index: {}]
  %s8 = sld [smem:[#allocation0]]
  $region38: #{tpu_custom_call.1} parent=0
    _
  %s10 = ssub.s32 1, %s8
  %s11 = scalar_select 0, %s10, %s8
  $region1: #{tpu_custom_call.1} parent=0
    #allocation2 [shape = 'u8[8192]{0}', space=vmem, size = 0x2000, scoped, tag = 'output window, operand 0, single buffered']
    #allocation3 [shape = 's32[1]{0}', space=sflag, size = 0x4, scoped, tag = 'scoped memory for tpu_custom_call.1']
    %12 = vsyncpa [#allocation3], 0
    // Predicated region
    $region2: #{tpu_custom_call.1} parent=1 // pred_check
      _
    $region3: #{tpu_custom_call.1} parent=1 // pred_check_branch
      %14 = sbr.rel (0) target = $region5
    $region4: #{tpu_custom_call.1} parent=1 // pred_region
      _
    $region5: #{tpu_custom_call.1} parent=1 // pred_fallthru
      _
    // Predicated region
    $region6: #{tpu_custom_call.1} parent=1 // pred_check
      _
    $region7: #{tpu_custom_call.1} parent=1 // pred_check_branch
      %16 = sbr.rel (0) target = $region9
    $region8: #{tpu_custom_call.1} parent=1 // pred_region
      _
    $region9: #{tpu_custom_call.1} parent=1 // pred_fallthru
      _
    // Predicated region
    $region10: #{tpu_custom_call.1} parent=1 // pred_check
      _
    $region11: #{tpu_custom_call.1} parent=1 // pred_check_branch
      %18 = sbr.rel (0) target = $region13
    $region12: #{tpu_custom_call.1} parent=1 // pred_region
      _
    $region13: #{tpu_custom_call.1} parent=1 // pred_fallthru
      _
    // Predicated region
    $region14: #{tpu_custom_call.1} parent=1 // pred_check
      _
    $region15: #{tpu_custom_call.1} parent=1 // pred_check_branch
      %20 = sbr.rel (0) target = $region17
    $region16: #{tpu_custom_call.1} parent=1 // pred_region
      _
    $region17: #{tpu_custom_call.1} parent=1 // pred_fallthru
      _
    // Predicated region
    $region18: #{tpu_custom_call.1} parent=1 // pred_check
      _
    $region19: #{tpu_custom_call.1} parent=1 // pred_check_branch
      %22 = sbr.rel (0) target = $region21
    $region20: #{tpu_custom_call.1} parent=1 // pred_region
      _
    $region21: #{tpu_custom_call.1} parent=1 // pred_fallthru
      _
    // Predicated region
    $region22: #{tpu_custom_call.1} parent=1 // pred_check
      _
    $region23: #{tpu_custom_call.1} parent=1 // pred_check_branch
      %24 = sbr.rel (0) target = $region25
    $region24: #{tpu_custom_call.1} parent=1 // pred_region
      _
    $region25: #{tpu_custom_call.1} parent=1 // pred_fallthru
      _
    // Predicated region
    $region26: #{tpu_custom_call.1} parent=1 // pred_check
      _
    $region27: #{tpu_custom_call.1} parent=1 // pred_check_branch
      %26 = sbr.rel (0) target = $region29
    $region28: #{tpu_custom_call.1} parent=1 // pred_region
      _
    $region29: #{tpu_custom_call.1} parent=1 // pred_fallthru
      _
    %v27 = vld [vmem:[%s0] sm:$0xff]
    %v28 = vld [vmem:[%s0 + $0x8] sm:$0xff]
    %v29 = vld [vmem:[%s1] sm:$0xff]
    %v30 = vld [vmem:[%s1 + $0x8] sm:$0xff]
    %v31 = vld [vmem:[%s1 + $0x10] sm:$0xff]
    %v32 = vld [vmem:[%s1 + $0x18] sm:$0xff]
    %v33 = vld [vmem:[%s2] sm:$0x1]
    %v35 = vlaneseq
    %v36 = vshrl.u32 %v35, 7
    %v37 = vsub.s32 0, %v36
    %v38 = vrot.slane %v33, %v37
    %vm40 = vcmask 261120
    %v42 = vsel %vm40, %v27, 0
    %v45 = vsel %vm40, %v28, 0
    %47 = vmatprep.subr.mxu0 0.0
    %48 = vmatpush1.msra.mxu0 %v29
    %49 = vmatprep.subr.mxu0 0.0
    %50 = vmatpush1.msra.mxu0 %v30
    %51 = vmatprep.subr.mxu0 0.0
    %52 = vmatpush1.msra.mxu0 %v31
    %53 = vmatprep.subr.mxu0 0.0
    %54 = vmatpush1.msra.mxu0 %v32
    %55 = vmatprep.subr.mxu0 0.0
    %56 = vmatpush1.msra.mxu0 0.0
    %57 = vmatprep.subr.mxu0 0.0
    %58 = vmatpush1.msra.mxu0 0.0
    %59 = vmatprep.subr.mxu0 0.0
    %60 = vmatpush1.msra.mxu0 0.0
    %61 = vmatprep.subr.mxu0 0.0
    %62 = vmatpush1.msra.mxu0 0.0
    %63 = vmatprep.subr.mxu0 0.0
    %64 = vmatpush1.msra.mxu0 0.0
    %65 = vmatprep.subr.mxu0 0.0
    %66 = vmatpush1.msra.mxu0 0.0
    %67 = vmatprep.subr.mxu0 0.0
    %68 = vmatpush1.msra.mxu0 0.0
    %69 = vmatprep.subr.mxu0 0.0
    %70 = vmatpush1.msra.mxu0 0.0
    %71 = vmatprep.subr.mxu0 0.0
    %72 = vmatpush1.msra.mxu0 0.0
    %73 = vmatprep.subr.mxu0 0.0
    %74 = vmatpush1.msra.mxu0 0.0
    %75 = vmatprep.subr.mxu0 0.0
    %76 = vmatpush1.msra.mxu0 0.0
    %77 = vmatprep.subr.mxu0 0.0
    %78 = vmatpush1.msra.mxu0 0.0
    %79 = vmatprep.subr.mxu0 0.0
    %80 = vmatpush1.msra.mxu0 0.0
    %81 = vmatprep.subr.mxu0 0.0
    %82 = vmatpush1.msra.mxu0 0.0
    %83 = vmatprep.subr.mxu0 0.0
    %84 = vmatpush1.msra.mxu0 0.0
    %85 = vmatprep.subr.mxu0 0.0
    %86 = vmatpush1.msra.mxu0 0.0
    %87 = vmatprep.subr.mxu0 0.0
    %88 = vmatpush1.msra.mxu0 0.0
    %89 = vmatprep.subr.mxu0 0.0
    %90 = vmatpush1.msra.mxu0 0.0
    %91 = vmatprep.subr.mxu0 0.0
    %92 = vmatpush1.msra.mxu0 0.0
    %93 = vmatprep.subr.mxu0 0.0
    %94 = vmatpush1.msra.mxu0 0.0
    %95 = vmatprep.subr.mxu0 0.0
    %96 = vmatpush1.msra.mxu0 0.0
    %97 = vmatprep.subr.mxu0 0.0
    %98 = vmatpush1.msra.mxu0 0.0
    %99 = vmatprep.subr.mxu0 0.0
    %100 = vmatpush1.msra.mxu0 0.0
    %101 = vmatprep.subr.mxu0 0.0
    %102 = vmatpush1.msra.mxu0 0.0
    %103 = vmatprep.subr.mxu0 0.0
    %104 = vmatpush1.msra.mxu0 0.0
    %105 = vmatprep.subr.mxu0 0.0
    %106 = vmatpush1.msra.mxu0 0.0
    %107 = vmatprep.subr.mxu0 0.0
    %108 = vmatpush1.msra.mxu0 0.0
    %109 = vmatprep.subr.mxu0 0.0
    %110 = vmatpush1.msra.mxu0 0.0
    %111 = vmatprep.mubr.f32.mxu0 0.0
    %112 = vmatmul.mubr.f32.gmra.mrb[0].mxu0 %v42
    %v113 = vpop.f32.mrb[0].mxu0
    %v114 = vadd.f32 %v38, %v113
    %v115 = vpop.f32.mrb[0].mxu0
    %116 = vmatprep.mubr.f32.mxu0 0.0
    %117 = vmatmul.mubr.f32.gmra.mrb[0].mxu0 %v45
    %v118 = vpop.f32.mrb[0].mxu0
    %v119 = vadd.f32 %v38, %v118
    %v120 = vpop.f32.mrb[0].mxu0
    %121 = vdwg.mxu0
    %v122 = vmax.f32 %v114, 0.0
    %v123 = vmax.f32 %v119, 0.0
    %v124 = vld [vmem:[%s3] sm:$0xff]
    %v125 = vld [vmem:[%s3 + $0x8] sm:$0xff]
    %v126 = vld [vmem:[%s3 + $0x10] sm:$0xff]
    %v127 = vld [vmem:[%s3 + $0x18] sm:$0xff]
    %v128 = vld [vmem:[%s3 + $0x20] sm:$0xff]
    %v129 = vld [vmem:[%s3 + $0x28] sm:$0xff]
    %v130 = vld [vmem:[%s3 + $0x30] sm:$0xff]
    %v131 = vld [vmem:[%s3 + $0x38] sm:$0xff]
    %v132 = vld [vmem:[%s4] sm:$0x1]
    %v134 = vlaneseq
    %v135 = vshrl.u32 %v134, 7
    %v136 = vsub.s32 0, %v135
    %v137 = vrot.slane %v132, %v136
    %vm139 = vcmask 523264
    %v141 = vsel %vm139, %v122, 0
    %v144 = vsel %vm139, %v123, 0
    %146 = vmatprep.subr.mxu0 0.0
    %147 = vmatpush1.msra.mxu0 %v124
    %148 = vmatprep.subr.mxu0 0.0
    %149 = vmatpush1.msra.mxu0 %v125
    %150 = vmatprep.subr.mxu0 0.0
    %151 = vmatpush1.msra.mxu0 %v126
    %152 = vmatprep.subr.mxu0 0.0
    %153 = vmatpush1.msra.mxu0 %v127
    %154 = vmatprep.subr.mxu0 0.0
    %155 = vmatpush1.msra.mxu0 %v128
    %156 = vmatprep.subr.mxu0 0.0
    %157 = vmatpush1.msra.mxu0 %v129
    %158 = vmatprep.subr.mxu0 0.0
    %159 = vmatpush1.msra.mxu0 %v130
    %160 = vmatprep.subr.mxu0 0.0
    %161 = vmatpush1.msra.mxu0 %v131
    %162 = vmatprep.subr.mxu0 0.0
    %163 = vmatpush1.msra.mxu0 0.0
    %164 = vmatprep.subr.mxu0 0.0
    %165 = vmatpush1.msra.mxu0 0.0
    %166 = vmatprep.subr.mxu0 0.0
    %167 = vmatpush1.msra.mxu0 0.0
    %168 = vmatprep.subr.mxu0 0.0
    %169 = vmatpush1.msra.mxu0 0.0
    %170 = vmatprep.subr.mxu0 0.0
    %171 = vmatpush1.msra.mxu0 0.0
    %172 = vmatprep.subr.mxu0 0.0
    %173 = vmatpush1.msra.mxu0 0.0
    %174 = vmatprep.subr.mxu0 0.0
    %175 = vmatpush1.msra.mxu0 0.0
    %176 = vmatprep.subr.mxu0 0.0
    %177 = vmatpush1.msra.mxu0 0.0
    %178 = vmatprep.subr.mxu0 0.0
    %179 = vmatpush1.msra.mxu0 0.0
    %180 = vmatprep.subr.mxu0 0.0
    %181 = vmatpush1.msra.mxu0 0.0
    %182 = vmatprep.subr.mxu0 0.0
    %183 = vmatpush1.msra.mxu0 0.0
    %184 = vmatprep.subr.mxu0 0.0
    %185 = vmatpush1.msra.mxu0 0.0
    %186 = vmatprep.subr.mxu0 0.0
    %187 = vmatpush1.msra.mxu0 0.0
    %188 = vmatprep.subr.mxu0 0.0
    %189 = vmatpush1.msra.mxu0 0.0
    %190 = vmatprep.subr.mxu0 0.0
    %191 = vmatpush1.msra.mxu0 0.0
    %192 = vmatprep.subr.mxu0 0.0
    %193 = vmatpush1.msra.mxu0 0.0
    %194 = vmatprep.subr.mxu0 0.0
    %195 = vmatpush1.msra.mxu0 0.0
    %196 = vmatprep.subr.mxu0 0.0
    %197 = vmatpush1.msra.mxu0 0.0
    %198 = vmatprep.subr.mxu0 0.0
    %199 = vmatpush1.msra.mxu0 0.0
    %200 = vmatprep.subr.mxu0 0.0
    %201 = vmatpush1.msra.mxu0 0.0
    %202 = vmatprep.subr.mxu0 0.0
    %203 = vmatpush1.msra.mxu0 0.0
    %204 = vmatprep.subr.mxu0 0.0
    %205 = vmatpush1.msra.mxu0 0.0
    %206 = vmatprep.subr.mxu0 0.0
    %207 = vmatpush1.msra.mxu0 0.0
    %208 = vmatprep.subr.mxu0 0.0
    %209 = vmatpush1.msra.mxu0 0.0
    %210 = vmatprep.mubr.f32.mxu0 0.0
    %211 = vmatmul.mubr.f32.gmra.mrb[0].mxu0 %v141
    %v212 = vpop.f32.mrb[0].mxu0
    %v213 = vadd.f32 %v137, %v212
    %v214 = vpop.f32.mrb[0].mxu0
    %215 = vmatprep.mubr.f32.mxu0 0.0
    %216 = vmatmul.mubr.f32.gmra.mrb[0].mxu0 %v144
    %v217 = vpop.f32.mrb[0].mxu0
    %v218 = vadd.f32 %v137, %v217
    %v219 = vpop.f32.mrb[0].mxu0
    %220 = vdwg.mxu0
    %v221 = vadd.f32 %v27, %v213
    %v222 = vadd.f32 %v28, %v218
    %v223 = vsel %vm40, %v221, 0.0
    %224 = vadd.xlane.f32.xlu0 %v223
    %v225 = vpop.xlane.xlu0 %224
    %v226 = vsel %vm40, %v222, 0.0
    %227 = vadd.xlane.f32.xlu0 %v226
    %v228 = vpop.xlane.xlu0 %227
    %v229 = vrcp.pop 32.0
    %v230 = vmul.f32 %v225, %v229
    %v231 = vmul.f32 %v228, %v229
    %v232 = vsub.f32 %v221, %v230
    %v233 = vsub.f32 %v222, %v231
    %v234 = vmul.f32 %v232, %v232
    %v235 = vmul.f32 %v233, %v233
    %v236 = vsel %vm40, %v234, 0.0
    %237 = vadd.xlane.f32.xlu0 %v236
    %v238 = vpop.xlane.xlu0 %237
    %v239 = vsel %vm40, %v235, 0.0
    %240 = vadd.xlane.f32.xlu0 %v239
    %v241 = vpop.xlane.xlu0 %240
    %v242 = vmul.f32 %v238, %v229
    %v243 = vmul.f32 %v241, %v229
    %v244 = vadd.f32 %v242, 1e-05
    %v245 = vadd.f32 %v243, 1e-05
    %v246 = vrsqrt.pop %v244
    %v247 = vrsqrt.pop %v245
    %v248 = vmul.f32 %v232, %v246
    %v249 = vmul.f32 %v233, %v247
    %v250 = vld [vmem:[%s5] sm:$0x1]
    %v252 = vlaneseq
    %v253 = vshrl.u32 %v252, 7
    %v254 = vsub.s32 0, %v253
    %v255 = vrot.slane %v250, %v254
    %v257 = vmul.f32 %v248, %v255
    %v258 = vmul.f32 %v249, %v255
    %v259 = vld [vmem:[%s6] sm:$0x1]
    %v261 = vlaneseq
    %v262 = vshrl.u32 %v261, 7
    %v263 = vsub.s32 0, %v262
    %v264 = vrot.slane %v259, %v263
    %v266 = vadd.f32 %v257, %v264
    %v267 = vadd.f32 %v258, %v264
    %268 = vst.msk [vmem:[#allocation2] sm:$0xff] %vm40, %v266
    %269 = vst.msk [vmem:[#allocation2 + $0x8] sm:$0xff] %vm40, %v267
    // Predicated region
    $region30: #{tpu_custom_call.1} parent=1 // pred_check
      _
    $region31: #{tpu_custom_call.1} parent=1 // pred_check_branch
      %271 = sbr.rel (0) target = $region33
    $region32: #{tpu_custom_call.1} parent=1 // pred_region
      %s273 = ssub.s32 256, 256
      %274 = vsyncadd [#allocation3], %s273
      %s275 = sshll.u32 [#allocation2], 4
      %s276 = int_to_ptr.vmem [resolvable:$true] %s275
      %281 = dma.vmem_to_hbm [thread:$0]  %s276, 256, %s7, [#allocation3], 128, 128, 8
    $region33: #{tpu_custom_call.1} parent=1 // pred_fallthru
      _
    // Predicated region
    $region34: #{tpu_custom_call.1} parent=1 // pred_check
      _
    $region35: #{tpu_custom_call.1} parent=1 // pred_check_branch
      %283 = sbr.rel (0) target = $region37
    $region36: #{tpu_custom_call.1} parent=1 // pred_region
      %284 = dma.done [#allocation3], 256
    $region37: #{tpu_custom_call.1} parent=1 // pred_fallthru
      _
    %285 = vsyncpa [#allocation3], 1

</llo_original>
